<compile_context>
chip_gen: v7x
topology: tpu7x:2x2x1
jax: 0.10.0
libtpu: 0.0.40
codegen_flags: <defaults>
</compile_context>

<pallas_src>
import jax
import jax.numpy as jnp
from jax.experimental import pallas as pl
from jax.experimental.pallas import tpu as pltpu


def _round_up(x, m):
    return ((x + m - 1) // m) * m


def _tagging_head_kernel(x_ref, w1_ref, b1_ref, w2_ref, b2_ref, tags_ref,
                         loss_out_ref, corr_out_ref):
    step = pl.program_id(1)

    @pl.when(step == 0)
    def _init():
        loss_out_ref[...] = jnp.zeros_like(loss_out_ref)
        corr_out_ref[...] = jnp.zeros_like(corr_out_ref)

    # dense -> tanh -> out_proj (dropout == identity in eval mode).
    # x / W1 / W2 are in the streaming compute dtype (bf16 by default); both
    # matmuls accumulate in f32 on the MXU; bias adds happen in f32.
    x = x_ref[...]                                              # (TT, H)
    h = jnp.dot(x, w1_ref[...], preferred_element_type=jnp.float32) + b1_ref[...]
    h = jnp.tanh(h)
    logits = (jnp.dot(h.astype(w2_ref.dtype), w2_ref[...],
                      preferred_element_type=jnp.float32)
              + b2_ref[...])                                    # (TT, Cp) f32

    tags = tags_ref[...]                                        # (TT, 1); -1 => ignore
    mask_f = (tags >= 0).astype(jnp.float32)                    # (TT, 1)

    # (1, Cp) iota; broadcast against the (TT, 1) tag column in the compare.
    class_ids = jax.lax.broadcasted_iota(jnp.int32, (1, logits.shape[-1]), 1)

    # single lane-axis max, reused for both logsumexp and the correctness test
    row_max = jnp.max(logits, axis=-1, keepdims=True)           # (TT, 1)
    sum_exp = jnp.sum(jnp.exp(logits - row_max), axis=-1, keepdims=True)
    lse = row_max + jnp.log(sum_exp)                            # (TT, 1)

    # per-token cross entropy: logsumexp(logits) - logits[tag]
    tgt_logit = jnp.sum(jnp.where(class_ids == tags, logits, 0.0),
                        axis=-1, keepdims=True)                 # (TT, 1)

    step_loss = jnp.sum((lse - tgt_logit) * mask_f)             # scalar
    # "prediction correct" <=> the target logit equals the row max; matches
    # torch.argmax(...) == tag except on exact floating-point ties, and saves
    # one full cross-lane argmax reduction per step.
    step_corr = jnp.sum(jnp.where(tgt_logit >= row_max, mask_f, 0.0))

    # Broadcast-accumulate the scalars into the resident output blocks
    # (every element ends holding the per-partition total; wrapper reads [0,0]).
    loss_out_ref[...] += step_loss
    corr_out_ref[...] += step_corr


def _default_num_partitions():
    # v7x has 2 TensorCores behind one device (megacore); v5e/v6e have 1, so a
    # partition axis there is just a serial loop plus extra padding.
    try:
        kind = jax.devices()[0].device_kind.lower()
    except Exception:
        return 1
    return 2 if ("v7" in kind or "7x" in kind) else 1


def _choose_token_tile(total_tokens, hidden, itemsize, num_partitions):
    # Target ~1 MiB per streamed x tile (amortizes per-grid-step overhead),
    # clamped to [256, 4096] and to the per-partition token count so tiny
    # inputs are not padded up to a huge tile.  Multiple of 128.
    target = (1 << 20) // max(1, hidden * itemsize)
    tile = max(256, min(4096, target))
    per_part = -(-total_tokens // num_partitions)
    tile = min(tile, _round_up(max(per_part, 1), 128))
    return _round_up(tile, 128)


def sequence_tagging_head(features, tags, masked_tokens, params, *,
                          compute_dtype=jnp.bfloat16,
                          token_tile=None, num_partitions=None):
    """Forward of SequenceTaggingHead (non-CRF, eval mode).

    features: (seq, batch, hidden); tags / masked_tokens: (seq, batch).
    Returns (nll_loss, ncorrect) summed over masked tokens.
    """
    seq_len, batch, hidden = features.shape
    w1, b1, w2, b2 = params
    inner = w1.shape[1]
    num_classes = w2.shape[1]

    if num_partitions is None:
        num_partitions = _default_num_partitions()
    itemsize = jnp.dtype(compute_dtype).itemsize

    T = seq_len * batch
    if token_tile is None:
        token_tile = _choose_token_tile(T, hidden, itemsize, num_partitions)
    assert token_tile % 128 == 0

    # --- pad class dim to a lane-dense multiple of 128 (inert padding) -------
    c_pad = _round_up(num_classes, 128)
    b2f = b2.astype(jnp.float32)
    w2c = w2.astype(compute_dtype)
    if c_pad != num_classes:
        w2p = jnp.zeros((inner, c_pad), compute_dtype).at[:, :num_classes].set(w2c)
        # -1e30 stays in f32 (bias add is f32): never the row max, exp() -> 0.
        b2p = jnp.full((c_pad,), -1e30, jnp.float32).at[:num_classes].set(b2f)
    else:
        w2p, b2p = w2c, b2f

    # --- flatten tokens; pack mask into tag column; pad token axis -----------
    x = features.reshape(T, hidden).astype(compute_dtype)
    tags_packed = jnp.where(masked_tokens, tags.astype(jnp.int32), -1).reshape(T, 1)

    per_part = -(-T // num_partitions)
    steps = -(-per_part // token_tile)               # grid steps per partition
    T_pad = num_partitions * steps * token_tile
    if T_pad != T:
        x = jnp.concatenate([x, jnp.zeros((T_pad - T, hidden), x.dtype)], axis=0)
        tags_packed = jnp.concatenate(
            [tags_packed, jnp.full((T_pad - T, 1), -1, jnp.int32)], axis=0)

    w1c = w1.astype(compute_dtype)
    b1r = b1.astype(jnp.float32).reshape(1, inner)
    b2r = b2p.reshape(1, c_pad)

    tok_map = lambda p, i: (p * steps + i, 0)        # streaming token tiles
    rep_map = lambda p, i: (0, 0)                    # resident weights / biases
    out_map = lambda p, i: (p, 0, 0)                 # per-partition partial sums

    # Per-step VMEM budget: double-buffered streams + (double-buffered) weights
    # + f32 intermediates, with headroom; raised above the per-chip scoped
    # default, capped at v7x's 64 MiB physical VMEM per TensorCore.
    vmem_budget = (
        2 * token_tile * hidden * itemsize                      # x tiles
        + 2 * token_tile * 128 * 4                              # tags column (lane-padded)
        + 2 * (hidden * inner + inner * c_pad) * itemsize       # W1 / W2
        + 4 * (inner + c_pad) * 8 * 4                           # biases (padded)
        + token_tile * (3 * c_pad + inner) * 4                  # logits/exp/h intermediates
        + 4 * 8 * 128 * 4)                                      # output blocks
    vmem_limit = int(min(max(int(vmem_budget * 1.5) + (8 << 20), 32 << 20), 64 << 20))

    loss_part, corr_part = pl.pallas_call(
        _tagging_head_kernel,
        out_shape=(jax.ShapeDtypeStruct((num_partitions, 8, 128), jnp.float32),
                   jax.ShapeDtypeStruct((num_partitions, 8, 128), jnp.float32)),
        grid_spec=pltpu.PrefetchScalarGridSpec(
            num_scalar_prefetch=0,
            grid=(num_partitions, steps),
            in_specs=[
                pl.BlockSpec((token_tile, hidden), tok_map),    # x tile (compute dtype)
                pl.BlockSpec((hidden, inner), rep_map),         # W1 (compute dtype)
                pl.BlockSpec((1, inner), rep_map),              # b1 (f32)
                pl.BlockSpec((inner, c_pad), rep_map),          # W2 (compute dtype, padded)
                pl.BlockSpec((1, c_pad), rep_map),               # b2 (f32, padded)
                pl.BlockSpec((token_tile, 1), tok_map),          # packed tags / mask
            ],
            out_specs=[
                pl.BlockSpec((1, 8, 128), out_map),             # loss partial
                pl.BlockSpec((1, 8, 128), out_map),             # ncorrect partial
            ],
        ),
        compiler_params=pltpu.CompilerParams(
            dimension_semantics=("parallel", "arbitrary"),
            vmem_limit_bytes=vmem_limit),
    )(x, w1c, b1r, w2p, b2r, tags_packed)

    nll_loss = jnp.sum(loss_part[:, 0, 0])
    ncorrect = jnp.rint(jnp.sum(corr_part[:, 0, 0])).astype(jnp.int32)
    return nll_loss, ncorrect


def _reference(features, tags, masked_tokens, params, compute_dtype=jnp.bfloat16):
    """Pure-JAX reference of the PyTorch forward (non-CRF, eval mode), using
    the same bf16-stream / f32-accumulate numerics as the kernel."""
    w1, b1, w2, b2 = params
    seq, batch, hidden = features.shape
    x = features.reshape(-1, hidden).astype(compute_dtype)
    h = jnp.dot(x, w1.astype(compute_dtype),
                preferred_element_type=jnp.float32) + b1.astype(jnp.float32)
    h = jnp.tanh(h)
    logits = jnp.dot(h.astype(compute_dtype), w2.astype(compute_dtype),
                     preferred_element_type=jnp.float32) + b2.astype(jnp.float32)
    logits = logits.reshape(seq, batch, -1)
    mask = masked_tokens.astype(jnp.float32)
    lse = jax.nn.logsumexp(logits, axis=-1)
    tgt = jnp.take_along_axis(logits, tags[..., None], axis=-1)[..., 0]
    nll = jnp.sum((lse - tgt) * mask)
    preds = jnp.argmax(logits, axis=-1)
    ncorrect = jnp.sum(((preds == tags) & masked_tokens).astype(jnp.int32))
    return nll, ncorrect


if __name__ == "__main__":
    # small shapes consistent with the module's forward
    seq_len, batch, hidden = 8, 2, 32
    inner_dim, num_classes = 32, 8
    # TODO(synk): CRF branch (use_crf=True) and decode()'s host-side list
    # building have no clean Pallas equivalent; only the standard
    # cross-entropy tagging path is implemented (dropout = identity, eval).

    key = jax.random.PRNGKey(0)
    kf, kw1, kb1, kw2, kb2, kt, km = jax.random.split(key, 7)

    features = jax.random.normal(kf, (seq_len, batch, hidden), dtype=jnp.float32)
    tags = jax.random.randint(kt, (seq_len, batch), 0, num_classes, dtype=jnp.int32)
    masked_tokens = jax.random.bernoulli(km, 0.7, (seq_len, batch))

    # deterministic parameter init (Linear-like scaling)
    w1 = jax.random.normal(kw1, (hidden, inner_dim), dtype=jnp.float32) / jnp.sqrt(hidden)
    b1 = jax.random.normal(kb1, (inner_dim,), dtype=jnp.float32) * 0.01
    w2 = jax.random.normal(kw2, (inner_dim, num_classes), dtype=jnp.float32) / jnp.sqrt(inner_dim)
    b2 = jax.random.normal(kb2, (num_classes,), dtype=jnp.float32) * 0.01
    params = (w1, b1, w2, b2)

    nll_loss, ncorrect = sequence_tagging_head(features, tags, masked_tokens, params)
    jax.block_until_ready((nll_loss, ncorrect))

    ref_loss, ref_ncorrect = _reference(features, tags, masked_tokens, params)
    # tolerance covers tanh-approximation (EUP vs XLA) and reduce-order deltas
    assert jnp.allclose(nll_loss, ref_loss, rtol=2e-3, atol=2e-2), (nll_loss, ref_loss)
    assert int(ncorrect) == int(ref_ncorrect), (ncorrect, ref_ncorrect)

    print("KERNEL_OK")
</pallas_src>

<mosaic_0001>
module attributes {stable_mosaic.version = 11 : i64} {
  func.func @_tagging_head_kernel(%arg0: i32, %arg1: i32, %arg2: memref<128x32xbf16, #tpu.memory_space<vmem>>, %arg3: memref<32x32xbf16, #tpu.memory_space<vmem>>, %arg4: memref<1x32xf32, #tpu.memory_space<vmem>>, %arg5: memref<32x128xbf16, #tpu.memory_space<vmem>>, %arg6: memref<1x128xf32, #tpu.memory_space<vmem>>, %arg7: memref<128x1xi32, #tpu.memory_space<vmem>>, %arg8: memref<1x8x128xf32, #tpu.memory_space<vmem>>, %arg9: memref<1x8x128xf32, #tpu.memory_space<vmem>>) attributes {dimension_semantics = [#tpu.dimension_semantics<parallel>, #tpu.dimension_semantics<arbitrary>], iteration_bounds = array<i64: 1, 1>, scalar_prefetch = 0 : i64, scratch_operands = 0 : i64, tpu.core_type = #tpu.core_type<tc>, window_params = [{transform_indices = @transform_0, window_bounds = array<i64: 128, 32>}, {pipeline_mode = #tpu.pipeline_mode<synchronous>, transform_indices = @transform_1, window_bounds = array<i64: 32, 32>}, {pipeline_mode = #tpu.pipeline_mode<synchronous>, transform_indices = @transform_2, window_bounds = array<i64: 1, 32>}, {pipeline_mode = #tpu.pipeline_mode<synchronous>, transform_indices = @transform_3, window_bounds = array<i64: 32, 128>}, {pipeline_mode = #tpu.pipeline_mode<synchronous>, transform_indices = @transform_4, window_bounds = array<i64: 1, 128>}, {transform_indices = @transform_5, window_bounds = array<i64: 128, 1>}, {transform_indices = @transform_6, window_bounds = array<i64: 1, 8, 128>}, {transform_indices = @transform_7, window_bounds = array<i64: 1, 8, 128>}]} {
    %c0_i32 = arith.constant 0 : i32
    %0 = arith.cmpi eq, %arg1, %c0_i32 : i32
    %1 = arith.extui %0 : i1 to i32
    %c0_i32_0 = arith.constant 0 : i32
    %2 = arith.cmpi ne, %1, %c0_i32_0 : i32
    scf.if %2 {
      %cst_33 = arith.constant 0.000000e+00 : f32
      %59 = vector.broadcast %cst_33 : f32 to vector<1x8x128xf32>
      %c0_34 = arith.constant 0 : index
      %c0_35 = arith.constant 0 : index
      %c0_36 = arith.constant 0 : index
      %60 = vector.load %arg8[%c0_34, %c0_35, %c0_36] : memref<1x8x128xf32, #tpu.memory_space<vmem>>, vector<1x8x128xf32>
      tpu.vector_store %arg8[%c0_34, %c0_35, %c0_36], %59 {strides = array<i32>} : memref<1x8x128xf32, #tpu.memory_space<vmem>>, vector<1x8x128xf32>,
      %cst_37 = arith.constant 0.000000e+00 : f32
      %61 = vector.broadcast %cst_37 : f32 to vector<1x8x128xf32>
      %c0_38 = arith.constant 0 : index
      %c0_39 = arith.constant 0 : index
      %c0_40 = arith.constant 0 : index
      %62 = vector.load %arg9[%c0_38, %c0_39, %c0_40] : memref<1x8x128xf32, #tpu.memory_space<vmem>>, vector<1x8x128xf32>
      tpu.vector_store %arg9[%c0_38, %c0_39, %c0_40], %61 {strides = array<i32>} : memref<1x8x128xf32, #tpu.memory_space<vmem>>, vector<1x8x128xf32>,
    } else {
    }
    %c0 = arith.constant 0 : index
    %c0_1 = arith.constant 0 : index
    %3 = vector.load %arg2[%c0, %c0_1] : memref<128x32xbf16, #tpu.memory_space<vmem>>, vector<128x32xbf16>
    %c0_2 = arith.constant 0 : index
    %c0_3 = arith.constant 0 : index
    %4 = vector.load %arg3[%c0_2, %c0_3] : memref<32x32xbf16, #tpu.memory_space<vmem>>, vector<32x32xbf16>
    %cst = arith.constant dense<0.000000e+00> : vector<128x32xf32>
    %5 = tpu.matmul %3, %4, %cst {dimension_numbers = #tpu.dot_dimension_numbers<[1], [0], [0], [1], [0, 0, 1, 1], [], []>} : vector<128x32xbf16>, vector<32x32xbf16>, vector<128x32xf32> -> vector<128x32xf32>
    %c0_4 = arith.constant 0 : index
    %c0_5 = arith.constant 0 : index
    %6 = vector.load %arg4[%c0_4, %c0_5] : memref<1x32xf32, #tpu.memory_space<vmem>>, vector<1x32xf32>
    %7 = vector.broadcast %6 : vector<1x32xf32> to vector<128x32xf32>
    %8 = arith.addf %5, %7 : vector<128x32xf32>
    %9 = math.tanh %8 : vector<128x32xf32>
    %10 = arith.truncf %9 : vector<128x32xf32> to vector<128x32xbf16>
    %c0_6 = arith.constant 0 : index
    %c0_7 = arith.constant 0 : index
    %11 = vector.load %arg5[%c0_6, %c0_7] : memref<32x128xbf16, #tpu.memory_space<vmem>>, vector<32x128xbf16>
    %cst_8 = arith.constant dense<0.000000e+00> : vector<128x128xf32>
    %12 = tpu.matmul %10, %11, %cst_8 {dimension_numbers = #tpu.dot_dimension_numbers<[1], [0], [0], [1], [0, 0, 1, 1], [], []>} : vector<128x32xbf16>, vector<32x128xbf16>, vector<128x128xf32> -> vector<128x128xf32>
    %c0_9 = arith.constant 0 : index
    %c0_10 = arith.constant 0 : index
    %13 = vector.load %arg6[%c0_9, %c0_10] : memref<1x128xf32, #tpu.memory_space<vmem>>, vector<1x128xf32>
    %14 = vector.broadcast %13 : vector<1x128xf32> to vector<128x128xf32>
    %15 = arith.addf %12, %14 : vector<128x128xf32>
    %c0_11 = arith.constant 0 : index
    %c0_12 = arith.constant 0 : index
    %16 = vector.load %arg7[%c0_11, %c0_12] : memref<128x1xi32, #tpu.memory_space<vmem>>, vector<128x1xi32>
    %c0_i32_13 = arith.constant 0 : i32
    %17 = vector.broadcast %c0_i32_13 : i32 to vector<128x1xi32>
    %18 = arith.cmpi sge, %16, %17 : vector<128x1xi32>
    %19 = arith.extui %18 : vector<128x1xi1> to vector<128x1xi32>
    %20 = arith.sitofp %19 : vector<128x1xi32> to vector<128x1xf32>
    %21 = tpu.iota {dimensions = array<i32: 1>} : vector<1x128xi32>
    %cst_14 = arith.constant dense<0xFF800000> : vector<128xf32>
    %22 = vector.multi_reduction <maximumf>, %15, %cst_14 [1] : vector<128x128xf32> to vector<128xf32>
    %23 = vector.shape_cast %22 : vector<128xf32> to vector<128x1xf32>
    %24 = vector.broadcast %23 : vector<128x1xf32> to vector<128x128xf32>
    %25 = arith.subf %15, %24 : vector<128x128xf32>
    %26 = math.exp %25 : vector<128x128xf32>
    %cst_15 = arith.constant dense<0.000000e+00> : vector<128xf32>
    %27 = vector.multi_reduction <add>, %26, %cst_15 [1] : vector<128x128xf32> to vector<128xf32>
    %28 = vector.shape_cast %27 : vector<128xf32> to vector<128x1xf32>
    %29 = math.log %28 : vector<128x1xf32>
    %30 = arith.addf %23, %29 : vector<128x1xf32>
    %31 = vector.broadcast %21 : vector<1x128xi32> to vector<128x128xi32>
    %32 = vector.broadcast %16 : vector<128x1xi32> to vector<128x128xi32>
    %33 = arith.cmpi eq, %31, %32 : vector<128x128xi32>
    %cst_16 = arith.constant 0.000000e+00 : f32
    %34 = vector.broadcast %cst_16 : f32 to vector<128x128xf32>
    %35 = arith.select %33, %15, %34 : vector<128x128xi1>, vector<128x128xf32>
    %cst_17 = arith.constant dense<0.000000e+00> : vector<128xf32>
    %36 = vector.multi_reduction <add>, %35, %cst_17 [1] : vector<128x128xf32> to vector<128xf32>
    %37 = vector.shape_cast %36 : vector<128xf32> to vector<128x1xf32>
    %38 = arith.subf %30, %37 : vector<128x1xf32>
    %39 = arith.mulf %38, %20 : vector<128x1xf32>
    %40 = vector.shape_cast %39 : vector<128x1xf32> to vector<1x128x1xf32>
    %cst_18 = arith.constant dense<0.000000e+00> : vector<1xf32>
    %41 = vector.multi_reduction <add>, %40, %cst_18 [1, 2] : vector<1x128x1xf32> to vector<1xf32>
    %42 = vector.shape_cast %41 : vector<1xf32> to vector<1x1x1xf32>
    %43 = vector.extract %42[0, 0, 0] : f32 from vector<1x1x1xf32>
    %44 = arith.cmpf oge, %37, %23 : vector<128x1xf32>
    %cst_19 = arith.constant 0.000000e+00 : f32
    %45 = vector.broadcast %cst_19 : f32 to vector<128x1xf32>
    %46 = arith.select %44, %20, %45 : vector<128x1xi1>, vector<128x1xf32>
    %47 = vector.shape_cast %46 : vector<128x1xf32> to vector<1x128x1xf32>
    %cst_20 = arith.constant dense<0.000000e+00> : vector<1xf32>
    %48 = vector.multi_reduction <add>, %47, %cst_20 [1, 2] : vector<1x128x1xf32> to vector<1xf32>
    %49 = vector.shape_cast %48 : vector<1xf32> to vector<1x1x1xf32>
    %50 = vector.extract %49[0, 0, 0] : f32 from vector<1x1x1xf32>
    %c0_21 = arith.constant 0 : index
    %c0_22 = arith.constant 0 : index
    %c0_23 = arith.constant 0 : index
    %51 = vector.load %arg8[%c0_21, %c0_22, %c0_23] : memref<1x8x128xf32, #tpu.memory_space<vmem>>, vector<1x8x128xf32>
    %52 = vector.broadcast %43 : f32 to vector<1x8x128xf32>
    %53 = arith.addf %51, %52 : vector<1x8x128xf32>
    %c0_24 = arith.constant 0 : index
    %c0_25 = arith.constant 0 : index
    %c0_26 = arith.constant 0 : index
    %54 = vector.load %arg8[%c0_24, %c0_25, %c0_26] : memref<1x8x128xf32, #tpu.memory_space<vmem>>, vector<1x8x128xf32>
    tpu.vector_store %arg8[%c0_24, %c0_25, %c0_26], %53 {strides = array<i32>} : memref<1x8x128xf32, #tpu.memory_space<vmem>>, vector<1x8x128xf32>,
    %c0_27 = arith.constant 0 : index
    %c0_28 = arith.constant 0 : index
    %c0_29 = arith.constant 0 : index
    %55 = vector.load %arg9[%c0_27, %c0_28, %c0_29] : memref<1x8x128xf32, #tpu.memory_space<vmem>>, vector<1x8x128xf32>
    %56 = vector.broadcast %50 : f32 to vector<1x8x128xf32>
    %57 = arith.addf %55, %56 : vector<1x8x128xf32>
    %c0_30 = arith.constant 0 : index
    %c0_31 = arith.constant 0 : index
    %c0_32 = arith.constant 0 : index
    %58 = vector.load %arg9[%c0_30, %c0_31, %c0_32] : memref<1x8x128xf32, #tpu.memory_space<vmem>>, vector<1x8x128xf32>
    tpu.vector_store %arg9[%c0_30, %c0_31, %c0_32], %57 {strides = array<i32>} : memref<1x8x128xf32, #tpu.memory_space<vmem>>, vector<1x8x128xf32>,
    return
  }
  func.func @transform_0(%arg0: i32, %arg1: i32) -> (i32, i32) {
    %c1_i32 = arith.constant 1 : i32
    %0 = arith.muli %arg0, %c1_i32 : i32
    %1 = arith.addi %0, %arg1 : i32
    %c0_i32 = arith.constant 0 : i32
    %c0_i32_0 = arith.constant 0 : i32
    return %1, %c0_i32 : i32, i32
  }
  func.func @transform_1(%arg0: i32, %arg1: i32) -> (i32, i32) {
    %c0_i32 = arith.constant 0 : i32
    %c0_i32_0 = arith.constant 0 : i32
    %c0_i32_1 = arith.constant 0 : i32
    return %c0_i32, %c0_i32_0 : i32, i32
  }
  func.func @transform_2(%arg0: i32, %arg1: i32) -> (i32, i32) {
    %c0_i32 = arith.constant 0 : i32
    %c0_i32_0 = arith.constant 0 : i32
    %c0_i32_1 = arith.constant 0 : i32
    return %c0_i32, %c0_i32_0 : i32, i32
  }
  func.func @transform_3(%arg0: i32, %arg1: i32) -> (i32, i32) {
    %c0_i32 = arith.constant 0 : i32
    %c0_i32_0 = arith.constant 0 : i32
    %c0_i32_1 = arith.constant 0 : i32
    return %c0_i32, %c0_i32_0 : i32, i32
  }
  func.func @transform_4(%arg0: i32, %arg1: i32) -> (i32, i32) {
    %c0_i32 = arith.constant 0 : i32
    %c0_i32_0 = arith.constant 0 : i32
    %c0_i32_1 = arith.constant 0 : i32
    return %c0_i32, %c0_i32_0 : i32, i32
  }
  func.func @transform_5(%arg0: i32, %arg1: i32) -> (i32, i32) {
    %c1_i32 = arith.constant 1 : i32
    %0 = arith.muli %arg0, %c1_i32 : i32
    %1 = arith.addi %0, %arg1 : i32
    %c0_i32 = arith.constant 0 : i32
    %c0_i32_0 = arith.constant 0 : i32
    return %1, %c0_i32 : i32, i32
  }
  func.func @transform_6(%arg0: i32, %arg1: i32) -> (i32, i32, i32) {
    %c0_i32 = arith.constant 0 : i32
    %c0_i32_0 = arith.constant 0 : i32
    %c0_i32_1 = arith.constant 0 : i32
    return %arg0, %c0_i32, %c0_i32_0 : i32, i32, i32
  }
  func.func @transform_7(%arg0: i32, %arg1: i32) -> (i32, i32, i32) {
    %c0_i32 = arith.constant 0 : i32
    %c0_i32_0 = arith.constant 0 : i32
    %c0_i32_1 = arith.constant 0 : i32
    return %arg0, %c0_i32, %c0_i32_0 : i32, i32, i32
  }
}

</mosaic_0001>

<llo_original>
// kernel: tpu_custom_call.1
$region0: #{tpu_custom_call.1}
  #allocation0 [shape = 'u32[]', space=smem, size = 0x4, offset = 0x4, fixed_abs, tag = 'smem constant byte address 0x4 - core index']
  #allocation1 [shape = 'u32[144,128]{1,0:T(1,128)}', space=vmem, size = 0x12000, scoped, tag = 'internal scratch']
  %s0 = inlined_call_operand.vmem [shape: bf16[128,32], index: 0, kind: input, shape index: {}]
  %s1 = inlined_call_operand.vmem [shape: bf16[32,32], index: 1, kind: input, shape index: {}]
  %s2 = inlined_call_operand.vmem [shape: f32[1,32], index: 2, kind: input, shape index: {}]
  %s3 = inlined_call_operand.vmem [shape: bf16[32,128], index: 3, kind: input, shape index: {}]
  %s4 = inlined_call_operand.vmem [shape: f32[1,128], index: 4, kind: input, shape index: {}]
  %s5 = inlined_call_operand.vmem [shape: s32[128,1], index: 5, kind: input, shape index: {}]
  %s6 = inlined_call_operand.hbm [shape: f32[1,8,128], index: 6, kind: output, shape index: {0}]
  %s7 = inlined_call_operand.hbm [shape: f32[1,8,128], index: 7, kind: output, shape index: {1}]
  %8 = xla_tuple %s6, %s7
  %s9 = sld [smem:[#allocation0]]
  $region46: #{tpu_custom_call.1} parent=0
    _
  %s11 = ssub.s32 1, %s9
  %s12 = scalar_select 0, %s11, %s9
  $region1: #{tpu_custom_call.1} parent=0
    #allocation2 [shape = 'u8[4096]{0}', space=vmem, size = 0x1000, scoped, tag = 'output window, operand 0, single buffered']
    #allocation3 [shape = 's32[1]{0}', space=sflag, size = 0x4, scoped, tag = 'scoped memory for tpu_custom_call.1']
    #allocation4 [shape = 'u8[4096]{0}', space=vmem, size = 0x1000, scoped, tag = 'output window, operand 1, single buffered']
    #allocation5 [shape = 's32[1]{0}', space=sflag, size = 0x4, scoped, tag = 'scoped memory for tpu_custom_call.1']
    %13 = vsyncpa [#allocation3], 0
    %14 = vsyncpa [#allocation5], 0
    // Predicated region
    $region2: #{tpu_custom_call.1} parent=1 // pred_check
      _
    $region3: #{tpu_custom_call.1} parent=1 // pred_check_branch
      %16 = sbr.rel (0) target = $region5
    $region4: #{tpu_custom_call.1} parent=1 // pred_region
      %s17 = sadd.s32 0, 0
      %s18 = smul.u32 16, %s17
      %p19 = scmp.lt.s32.totalorder %s18, 15
      %s20 = scalar_select %p19, %s18, 15
      %s21 = smul.addr %s20, 4
      %s22 = scalar_lea.vmem %s0, %s21
      %s23 = sadd.s32 0, 0
      %s24 = smul.u32 16, %s23
    $region5: #{tpu_custom_call.1} parent=1 // pred_fallthru
      _
    // Predicated region
    $region6: #{tpu_custom_call.1} parent=1 // pred_check
      _
    $region7: #{tpu_custom_call.1} parent=1 // pred_check_branch
      %26 = sbr.rel (0) target = $region9
    $region8: #{tpu_custom_call.1} parent=1 // pred_region
      _
    $region9: #{tpu_custom_call.1} parent=1 // pred_fallthru
      _
    // Predicated region
    $region10: #{tpu_custom_call.1} parent=1 // pred_check
      _
    $region11: #{tpu_custom_call.1} parent=1 // pred_check_branch
      %28 = sbr.rel (0) target = $region13
    $region12: #{tpu_custom_call.1} parent=1 // pred_region
      _
    $region13: #{tpu_custom_call.1} parent=1 // pred_fallthru
      _
    // Predicated region
    $region14: #{tpu_custom_call.1} parent=1 // pred_check
      _
    $region15: #{tpu_custom_call.1} parent=1 // pred_check_branch
      %30 = sbr.rel (0) target = $region17
    $region16: #{tpu_custom_call.1} parent=1 // pred_region
      _
    $region17: #{tpu_custom_call.1} parent=1 // pred_fallthru
      _
    // Predicated region
    $region18: #{tpu_custom_call.1} parent=1 // pred_check
      _
    $region19: #{tpu_custom_call.1} parent=1 // pred_check_branch
      %32 = sbr.rel (0) target = $region21
    $region20: #{tpu_custom_call.1} parent=1 // pred_region
      _
    $region21: #{tpu_custom_call.1} parent=1 // pred_fallthru
      _
    // Predicated region
    $region22: #{tpu_custom_call.1} parent=1 // pred_check
      _
    $region23: #{tpu_custom_call.1} parent=1 // pred_check_branch
      %34 = sbr.rel (0) target = $region25
    $region24: #{tpu_custom_call.1} parent=1 // pred_region
      %s35 = sadd.s32 0, 0
      %s36 = smul.u32 16, %s35
      %p37 = scmp.lt.s32.totalorder %s36, 15
      %s38 = scalar_select %p37, %s36, 15
      %s39 = smul.addr %s38, 8
      %s40 = scalar_lea.vmem %s5, %s39
      %s41 = sadd.s32 0, 0
      %s42 = smul.u32 16, %s41
    $region25: #{tpu_custom_call.1} parent=1 // pred_fallthru
      _
    %s43 = sadd.s32 0, 0
    %s44 = smul.u32 16, %s43
    %p45 = scmp.lt.s32.totalorder %s44, 15
    %s46 = scalar_select %p45, %s44, 15
    %s47 = smul.addr %s46, 4
    %s48 = scalar_lea.vmem %s0, %s47
    %s49 = sadd.s32 0, 0
    %s50 = smul.u32 16, %s49
    %p51 = scmp.lt.s32.totalorder %s50, 15
    %s52 = scalar_select %p51, %s50, 15
    %s53 = smul.addr %s52, 8
    %s54 = scalar_lea.vmem %s5, %s53
    %s55 = sadd.s32 0, 0
    %s56 = smul.u32 16, %s55
    %p57 = scmp.lt.s32.totalorder %s56, 15
    %s58 = scalar_select %p57, %s56, 15
    %s59 = smul.addr %s58, 4
    %s60 = scalar_lea.vmem %s0, %s59
    %s61 = sadd.s32 0, 0
    %s62 = smul.u32 16, %s61
    %s63 = sadd.s32 0, 0
    %s64 = smul.u32 16, %s63
    %p65 = scmp.lt.s32.totalorder %s64, 15
    %s66 = scalar_select %p65, %s64, 15
    %s67 = smul.addr %s66, 8
    %s68 = scalar_lea.vmem %s5, %s67
    %s69 = sadd.s32 0, 0
    %s70 = smul.u32 16, %s69
    %p72 = scmp.eq.s32.totalorder 0, 0
    // Predicated region
    $region26: #{tpu_custom_call.1} parent=1 // pred_check
      %p73 = pneg %p72
    $region27: #{tpu_custom_call.1} parent=1 // pred_check_branch
      %75 = sbr.rel (%p73) target = $region29
    $region28: #{tpu_custom_call.1} parent=1 // pred_region
      %76 = vst [vmem:[#allocation2] sm:$0xff] 0.0
      %77 = vst [vmem:[#allocation4] sm:$0xff] 0.0
    $region29: #{tpu_custom_call.1} parent=1 // pred_fallthru
      _
    %v78 = vld [vmem:[%s60] sm:$0xf]
    %v79 = vld [vmem:[%s60 + $0x4] sm:$0xf]
    %v80 = vld [vmem:[%s60 + $0x8] sm:$0xf]
    %v81 = vld [vmem:[%s60 + $0xc] sm:$0xf]
    %v82 = vld [vmem:[%s60 + $0x10] sm:$0xf]
    %v83 = vld [vmem:[%s60 + $0x14] sm:$0xf]
    %v84 = vld [vmem:[%s60 + $0x18] sm:$0xf]
    %v85 = vld [vmem:[%s60 + $0x1c] sm:$0xf]
    %v86 = vld [vmem:[%s60 + $0x20] sm:$0xf]
    %v87 = vld [vmem:[%s60 + $0x24] sm:$0xf]
    %v88 = vld [vmem:[%s60 + $0x28] sm:$0xf]
    %v89 = vld [vmem:[%s60 + $0x2c] sm:$0xf]
    %v90 = vld [vmem:[%s60 + $0x30] sm:$0xf]
    %v91 = vld [vmem:[%s60 + $0x34] sm:$0xf]
    %v92 = vld [vmem:[%s60 + $0x38] sm:$0xf]
    %v93 = vld [vmem:[%s60 + $0x3c] sm:$0xf]
    %v94 = vld [vmem:[%s1] sm:$0xf]
    %v95 = vld [vmem:[%s1 + $0x4] sm:$0xf]
    %v96 = vld [vmem:[%s1 + $0x8] sm:$0xf]
    %v97 = vld [vmem:[%s1 + $0xc] sm:$0xf]
    %v98 = vld [vmem:[%s2] sm:$0x1]
    %v100 = vlaneseq
    %v101 = vshrl.u32 %v100, 7
    %v102 = vsub.s32 0, %v101
    %v103 = vrot.slane %v98, %v102
    %v121 = vunpack.c.l.b16 %v78
    %v122 = vunpack.c.l.b16 %v79
    %v123 = vunpack.c.l.b16 %v80
    %v124 = vunpack.c.l.b16 %v81
    %v125 = vunpack.c.l.b16 %v82
    %v126 = vunpack.c.l.b16 %v83
    %v127 = vunpack.c.l.b16 %v84
    %v128 = vunpack.c.l.b16 %v85
    %v129 = vunpack.c.l.b16 %v86
    %v130 = vunpack.c.l.b16 %v87
    %v131 = vunpack.c.l.b16 %v88
    %v132 = vunpack.c.l.b16 %v89
    %v133 = vunpack.c.l.b16 %v90
    %v134 = vunpack.c.l.b16 %v91
    %v135 = vunpack.c.l.b16 %v92
    %v136 = vunpack.c.l.b16 %v93
    %v137 = vpack.c.b16 %v122, %v121
    %v138 = vpack.c.b16 %v124, %v123
    %v139 = vpack.c.b16 %v126, %v125
    %v140 = vpack.c.b16 %v128, %v127
    %v141 = vpack.c.b16 %v130, %v129
    %v142 = vpack.c.b16 %v132, %v131
    %v143 = vpack.c.b16 %v134, %v133
    %v144 = vpack.c.b16 %v136, %v135
    %v149 = vunpack.c.l.b16 %v94
    %v150 = vunpack.c.l.b16 %v95
    %v151 = vunpack.c.l.b16 %v96
    %v152 = vunpack.c.l.b16 %v97
    %v153 = vpack.c.b16 %v150, %v149
    %v154 = vpack.c.b16 %v152, %v151
    %vm157 = vcmask 261120
    %v159 = vsel %vm157, %v137, 0
    %v162 = vsel %vm157, %v138, 0
    %v165 = vsel %vm157, %v139, 0
    %v168 = vsel %vm157, %v140, 0
    %v171 = vsel %vm157, %v141, 0
    %v174 = vsel %vm157, %v142, 0
    %v177 = vsel %vm157, %v143, 0
    %v180 = vsel %vm157, %v144, 0
    %182 = vmatprep.subr.bf16.mxu0 0
    %183 = vmatpush1.bf16.msra.mxu0 %v153
    %184 = vmatprep.subr.bf16.mxu0 0
    %185 = vmatpush1.bf16.msra.mxu0 %v154
    %186 = vmatprep.subr.bf16.mxu0 0
    %187 = vmatpush1.bf16.msra.mxu0 0
    %188 = vmatprep.subr.bf16.mxu0 0
    %189 = vmatpush1.bf16.msra.mxu0 0
    %190 = vmatprep.subr.bf16.mxu0 0
    %191 = vmatpush1.bf16.msra.mxu0 0
    %192 = vmatprep.subr.bf16.mxu0 0
    %193 = vmatpush1.bf16.msra.mxu0 0
    %194 = vmatprep.subr.bf16.mxu0 0
    %195 = vmatpush1.bf16.msra.mxu0 0
    %196 = vmatprep.subr.bf16.mxu0 0
    %197 = vmatpush1.bf16.msra.mxu0 0
    %198 = vmatprep.subr.bf16.mxu0 0
    %199 = vmatpush1.bf16.msra.mxu0 0
    %200 = vmatprep.subr.bf16.mxu0 0
    %201 = vmatpush1.bf16.msra.mxu0 0
    %202 = vmatprep.subr.bf16.mxu0 0
    %203 = vmatpush1.bf16.msra.mxu0 0
    %204 = vmatprep.subr.bf16.mxu0 0
    %205 = vmatpush1.bf16.msra.mxu0 0
    %206 = vmatprep.subr.bf16.mxu0 0
    %207 = vmatpush1.bf16.msra.mxu0 0
    %208 = vmatprep.subr.bf16.mxu0 0
    %209 = vmatpush1.bf16.msra.mxu0 0
    %210 = vmatprep.subr.bf16.mxu0 0
    %211 = vmatpush1.bf16.msra.mxu0 0
    %212 = vmatprep.subr.bf16.mxu0 0
    %213 = vmatpush1.bf16.msra.mxu0 0
    %214 = vmatprep.mubr.bf16.mxu0 0
    %215 = vmatmul.mubr.bf16.gmra.mrb[0].mxu0 %v159
    %v216 = vpop.f32.mrb[0].mxu0
    %v217 = vadd.f32 %v103, %v216
    %v218 = vpop.f32.mrb[0].mxu0
    %v219 = vpop.f32.mrb[0].mxu0
    %v220 = vadd.f32 %v103, %v219
    %v221 = vpop.f32.mrb[0].mxu0
    %222 = vmatprep.mubr.bf16.mxu0 0
    %223 = vmatmul.mubr.bf16.gmra.mrb[0].mxu0 %v162
    %v224 = vpop.f32.mrb[0].mxu0
    %v225 = vadd.f32 %v103, %v224
    %v226 = vpop.f32.mrb[0].mxu0
    %v227 = vpop.f32.mrb[0].mxu0
    %v228 = vadd.f32 %v103, %v227
    %v229 = vpop.f32.mrb[0].mxu0
    %230 = vmatprep.mubr.bf16.mxu0 0
    %231 = vmatmul.mubr.bf16.gmra.mrb[0].mxu0 %v165
    %v232 = vpop.f32.mrb[0].mxu0
    %v233 = vadd.f32 %v103, %v232
    %v234 = vpop.f32.mrb[0].mxu0
    %v235 = vpop.f32.mrb[0].mxu0
    %v236 = vadd.f32 %v103, %v235
    %v237 = vpop.f32.mrb[0].mxu0
    %238 = vmatprep.mubr.bf16.mxu0 0
    %239 = vmatmul.mubr.bf16.gmra.mrb[0].mxu0 %v168
    %v240 = vpop.f32.mrb[0].mxu0
    %v241 = vadd.f32 %v103, %v240
    %v242 = vpop.f32.mrb[0].mxu0
    %v243 = vpop.f32.mrb[0].mxu0
    %v244 = vadd.f32 %v103, %v243
    %v245 = vpop.f32.mrb[0].mxu0
    %246 = vmatprep.mubr.bf16.mxu0 0
    %247 = vmatmul.mubr.bf16.gmra.mrb[0].mxu0 %v171
    %v248 = vpop.f32.mrb[0].mxu0
    %v249 = vadd.f32 %v103, %v248
    %v250 = vpop.f32.mrb[0].mxu0
    %v251 = vpop.f32.mrb[0].mxu0
    %v252 = vadd.f32 %v103, %v251
    %v253 = vpop.f32.mrb[0].mxu0
    %254 = vmatprep.mubr.bf16.mxu0 0
    %255 = vmatmul.mubr.bf16.gmra.mrb[0].mxu0 %v174
    %v256 = vpop.f32.mrb[0].mxu0
    %v257 = vadd.f32 %v103, %v256
    %v258 = vpop.f32.mrb[0].mxu0
    %v259 = vpop.f32.mrb[0].mxu0
    %v260 = vadd.f32 %v103, %v259
    %v261 = vpop.f32.mrb[0].mxu0
    %262 = vmatprep.mubr.bf16.mxu0 0
    %263 = vmatmul.mubr.bf16.gmra.mrb[0].mxu0 %v177
    %v264 = vpop.f32.mrb[0].mxu0
    %v265 = vadd.f32 %v103, %v264
    %v266 = vpop.f32.mrb[0].mxu0
    %v267 = vpop.f32.mrb[0].mxu0
    %v268 = vadd.f32 %v103, %v267
    %v269 = vpop.f32.mrb[0].mxu0
    %270 = vmatprep.mubr.bf16.mxu0 0
    %271 = vmatmul.mubr.bf16.gmra.mrb[0].mxu0 %v180
    %v272 = vpop.f32.mrb[0].mxu0
    %v273 = vadd.f32 %v103, %v272
    %v274 = vpop.f32.mrb[0].mxu0
    %v275 = vpop.f32.mrb[0].mxu0
    %v276 = vadd.f32 %v103, %v275
    %v277 = vpop.f32.mrb[0].mxu0
    %278 = vdwg.mxu0
    %v279 = vtanh.pop %v217
    %v280 = vtanh.pop %v220
    %v281 = vtanh.pop %v225
    %v282 = vtanh.pop %v228
    %v283 = vtanh.pop %v233
    %v284 = vtanh.pop %v236
    %v285 = vtanh.pop %v241
    %v286 = vtanh.pop %v244
    %v287 = vtanh.pop %v249
    %v288 = vtanh.pop %v252
    %v289 = vtanh.pop %v257
    %v290 = vtanh.pop %v260
    %v291 = vtanh.pop %v265
    %v292 = vtanh.pop %v268
    %v293 = vtanh.pop %v273
    %v294 = vtanh.pop %v276
    %v295 = vpack.c.bf16 %v280, %v279
    %v296 = vpack.c.bf16 %v282, %v281
    %v297 = vpack.c.bf16 %v284, %v283
    %v298 = vpack.c.bf16 %v286, %v285
    %v299 = vpack.c.bf16 %v288, %v287
    %v300 = vpack.c.bf16 %v290, %v289
    %v301 = vpack.c.bf16 %v292, %v291
    %v302 = vpack.c.bf16 %v294, %v293
    %v303 = vld [vmem:[%s3] sm:$0xf]
    %v304 = vld [vmem:[%s3 + $0x4] sm:$0xf]
    %v305 = vld [vmem:[%s3 + $0x8] sm:$0xf]
    %v306 = vld [vmem:[%s3 + $0xc] sm:$0xf]
    %v307 = vld [vmem:[%s4] sm:$0x1]
    %v309 = vlaneseq
    %v310 = vshrl.u32 %v309, 7
    %v311 = vsub.s32 0, %v310
    %v312 = vrot.slane %v307, %v311
    %v318 = vunpack.c.l.b16 %v303
    %v319 = vunpack.c.l.b16 %v304
    %v320 = vunpack.c.l.b16 %v305
    %v321 = vunpack.c.l.b16 %v306
    %v322 = vpack.c.b16 %v319, %v318
    %v323 = vpack.c.b16 %v321, %v320
    %v327 = vsel %vm157, %v295, 0
    %v330 = vsel %vm157, %v296, 0
    %v333 = vsel %vm157, %v297, 0
    %v336 = vsel %vm157, %v298, 0
    %v339 = vsel %vm157, %v299, 0
    %v342 = vsel %vm157, %v300, 0
    %v345 = vsel %vm157, %v301, 0
    %v348 = vsel %vm157, %v302, 0
    %350 = vmatprep.subr.bf16.mxu0 0
    %351 = vmatpush1.bf16.msra.mxu0 %v322
    %352 = vmatprep.subr.bf16.mxu0 0
    %353 = vmatpush1.bf16.msra.mxu0 %v323
    %354 = vmatprep.subr.bf16.mxu0 0
    %355 = vmatpush1.bf16.msra.mxu0 0
    %356 = vmatprep.subr.bf16.mxu0 0
    %357 = vmatpush1.bf16.msra.mxu0 0
    %358 = vmatprep.subr.bf16.mxu0 0
    %359 = vmatpush1.bf16.msra.mxu0 0
    %360 = vmatprep.subr.bf16.mxu0 0
    %361 = vmatpush1.bf16.msra.mxu0 0
    %362 = vmatprep.subr.bf16.mxu0 0
    %363 = vmatpush1.bf16.msra.mxu0 0
    %364 = vmatprep.subr.bf16.mxu0 0
    %365 = vmatpush1.bf16.msra.mxu0 0
    %366 = vmatprep.subr.bf16.mxu0 0
    %367 = vmatpush1.bf16.msra.mxu0 0
    %368 = vmatprep.subr.bf16.mxu0 0
    %369 = vmatpush1.bf16.msra.mxu0 0
    %370 = vmatprep.subr.bf16.mxu0 0
    %371 = vmatpush1.bf16.msra.mxu0 0
    %372 = vmatprep.subr.bf16.mxu0 0
    %373 = vmatpush1.bf16.msra.mxu0 0
    %374 = vmatprep.subr.bf16.mxu0 0
    %375 = vmatpush1.bf16.msra.mxu0 0
    %376 = vmatprep.subr.bf16.mxu0 0
    %377 = vmatpush1.bf16.msra.mxu0 0
    %378 = vmatprep.subr.bf16.mxu0 0
    %379 = vmatpush1.bf16.msra.mxu0 0
    %380 = vmatprep.subr.bf16.mxu0 0
    %381 = vmatpush1.bf16.msra.mxu0 0
    %382 = vmatprep.mubr.bf16.mxu0 0
    %383 = vmatmul.mubr.bf16.gmra.mrb[0].mxu0 %v327
    %v384 = vpop.f32.mrb[0].mxu0
    %v385 = vadd.f32 %v312, %v384
    %v386 = vpop.f32.mrb[0].mxu0
    %v387 = vpop.f32.mrb[0].mxu0
    %v388 = vadd.f32 %v312, %v387
    %v389 = vpop.f32.mrb[0].mxu0
    %390 = vmatprep.mubr.bf16.mxu0 0
    %391 = vmatmul.mubr.bf16.gmra.mrb[0].mxu0 %v330
    %v392 = vpop.f32.mrb[0].mxu0
    %v393 = vadd.f32 %v312, %v392
    %v394 = vpop.f32.mrb[0].mxu0
    %v395 = vpop.f32.mrb[0].mxu0
    %v396 = vadd.f32 %v312, %v395
    %v397 = vpop.f32.mrb[0].mxu0
    %398 = vmatprep.mubr.bf16.mxu0 0
    %399 = vmatmul.mubr.bf16.gmra.mrb[0].mxu0 %v333
    %v400 = vpop.f32.mrb[0].mxu0
    %v401 = vadd.f32 %v312, %v400
    %v402 = vpop.f32.mrb[0].mxu0
    %v403 = vpop.f32.mrb[0].mxu0
    %v404 = vadd.f32 %v312, %v403
    %v405 = vpop.f32.mrb[0].mxu0
    %406 = vmatprep.mubr.bf16.mxu0 0
    %407 = vmatmul.mubr.bf16.gmra.mrb[0].mxu0 %v336
    %v408 = vpop.f32.mrb[0].mxu0
    %v409 = vadd.f32 %v312, %v408
    %v410 = vpop.f32.mrb[0].mxu0
    %v411 = vpop.f32.mrb[0].mxu0
    %v412 = vadd.f32 %v312, %v411
    %v413 = vpop.f32.mrb[0].mxu0
    %414 = vmatprep.mubr.bf16.mxu0 0
    %415 = vmatmul.mubr.bf16.gmra.mrb[0].mxu0 %v339
    %v416 = vpop.f32.mrb[0].mxu0
    %v417 = vadd.f32 %v312, %v416
    %v418 = vpop.f32.mrb[0].mxu0
    %v419 = vpop.f32.mrb[0].mxu0
    %v420 = vadd.f32 %v312, %v419
    %v421 = vpop.f32.mrb[0].mxu0
    %422 = vmatprep.mubr.bf16.mxu0 0
    %423 = vmatmul.mubr.bf16.gmra.mrb[0].mxu0 %v342
    %v424 = vpop.f32.mrb[0].mxu0
    %v425 = vadd.f32 %v312, %v424
    %v426 = vpop.f32.mrb[0].mxu0
    %v427 = vpop.f32.mrb[0].mxu0
    %v428 = vadd.f32 %v312, %v427
    %v429 = vpop.f32.mrb[0].mxu0
    %430 = vmatprep.mubr.bf16.mxu0 0
    %431 = vmatmul.mubr.bf16.gmra.mrb[0].mxu0 %v345
    %v432 = vpop.f32.mrb[0].mxu0
    %v433 = vadd.f32 %v312, %v432
    %v434 = vpop.f32.mrb[0].mxu0
    %v435 = vpop.f32.mrb[0].mxu0
    %v436 = vadd.f32 %v312, %v435
    %v437 = vpop.f32.mrb[0].mxu0
    %438 = vmatprep.mubr.bf16.mxu0 0
    %439 = vmatmul.mubr.bf16.gmra.mrb[0].mxu0 %v348
    %v440 = vpop.f32.mrb[0].mxu0
    %v441 = vadd.f32 %v312, %v440
    %v442 = vpop.f32.mrb[0].mxu0
    %v443 = vpop.f32.mrb[0].mxu0
    %v444 = vadd.f32 %v312, %v443
    %v445 = vpop.f32.mrb[0].mxu0
    %446 = vdwg.mxu0
    %v447 = vld [vmem:[%s68] sm:$0xff]
    %v448 = vld [vmem:[%s68 + $0x8] sm:$0xff]
    %v449 = vld [vmem:[%s68 + $0x10] sm:$0xff]
    %v450 = vld [vmem:[%s68 + $0x18] sm:$0xff]
    %v451 = vld [vmem:[%s68 + $0x20] sm:$0xff]
    %v452 = vld [vmem:[%s68 + $0x28] sm:$0xff]
    %v453 = vld [vmem:[%s68 + $0x30] sm:$0xff]
    %v454 = vld [vmem:[%s68 + $0x38] sm:$0xff]
    %v455 = vld [vmem:[%s68 + $0x40] sm:$0xff]
    %v456 = vld [vmem:[%s68 + $0x48] sm:$0xff]
    %v457 = vld [vmem:[%s68 + $0x50] sm:$0xff]
    %v458 = vld [vmem:[%s68 + $0x58] sm:$0xff]
    %v459 = vld [vmem:[%s68 + $0x60] sm:$0xff]
    %v460 = vld [vmem:[%s68 + $0x68] sm:$0xff]
    %v461 = vld [vmem:[%s68 + $0x70] sm:$0xff]
    %v462 = vld [vmem:[%s68 + $0x78] sm:$0xff]
    %vm463 = vcmp.ge.s32.totalorder %v447, 0
    %vm464 = vcmp.ge.s32.totalorder %v448, 0
    %vm465 = vcmp.ge.s32.totalorder %v449, 0
    %vm466 = vcmp.ge.s32.totalorder %v450, 0
    %vm467 = vcmp.ge.s32.totalorder %v451, 0
    %vm468 = vcmp.ge.s32.totalorder %v452, 0
    %vm469 = vcmp.ge.s32.totalorder %v453, 0
    %vm470 = vcmp.ge.s32.totalorder %v454, 0
    %vm471 = vcmp.ge.s32.totalorder %v455, 0
    %vm472 = vcmp.ge.s32.totalorder %v456, 0
    %vm473 = vcmp.ge.s32.totalorder %v457, 0
    %vm474 = vcmp.ge.s32.totalorder %v458, 0
    %vm475 = vcmp.ge.s32.totalorder %v459, 0
    %vm476 = vcmp.ge.s32.totalorder %v460, 0
    %vm477 = vcmp.ge.s32.totalorder %v461, 0
    %vm478 = vcmp.ge.s32.totalorder %v462, 0
    %v479 = vsel %vm463, 1, 0
    %v480 = vsel %vm464, 1, 0
    %v481 = vsel %vm465, 1, 0
    %v482 = vsel %vm466, 1, 0
    %v483 = vsel %vm467, 1, 0
    %v484 = vsel %vm468, 1, 0
    %v485 = vsel %vm469, 1, 0
    %v486 = vsel %vm470, 1, 0
    %v487 = vsel %vm471, 1, 0
    %v488 = vsel %vm472, 1, 0
    %v489 = vsel %vm473, 1, 0
    %v490 = vsel %vm474, 1, 0
    %v491 = vsel %vm475, 1, 0
    %v492 = vsel %vm476, 1, 0
    %v493 = vsel %vm477, 1, 0
    %v494 = vsel %vm478, 1, 0
    %v495 = vcvt.s32.f32 %v479
    %v496 = vcvt.s32.f32 %v480
    %v497 = vcvt.s32.f32 %v481
    %v498 = vcvt.s32.f32 %v482
    %v499 = vcvt.s32.f32 %v483
    %v500 = vcvt.s32.f32 %v484
    %v501 = vcvt.s32.f32 %v485
    %v502 = vcvt.s32.f32 %v486
    %v503 = vcvt.s32.f32 %v487
    %v504 = vcvt.s32.f32 %v488
    %v505 = vcvt.s32.f32 %v489
    %v506 = vcvt.s32.f32 %v490
    %v507 = vcvt.s32.f32 %v491
    %v508 = vcvt.s32.f32 %v492
    %v509 = vcvt.s32.f32 %v493
    %v510 = vcvt.s32.f32 %v494
    %v511 = vlaneseq
    %v512 = vand.u32 %v511, 127
    %513 = vmax.xlane.f32.xlu0 %v385
    %v514 = vpop.xlane.xlu0 %513
    %515 = vmax.xlane.f32.xlu0 %v388
    %v516 = vpop.xlane.xlu0 %515
    %517 = vmax.xlane.f32.xlu0 %v393
    %v518 = vpop.xlane.xlu0 %517
    %519 = vmax.xlane.f32.xlu0 %v396
    %v520 = vpop.xlane.xlu0 %519
    %521 = vmax.xlane.f32.xlu0 %v401
    %v522 = vpop.xlane.xlu0 %521
    %523 = vmax.xlane.f32.xlu0 %v404
    %v524 = vpop.xlane.xlu0 %523
    %525 = vmax.xlane.f32.xlu0 %v409
    %v526 = vpop.xlane.xlu0 %525
    %527 = vmax.xlane.f32.xlu0 %v412
    %v528 = vpop.xlane.xlu0 %527
    %529 = vmax.xlane.f32.xlu0 %v417
    %v530 = vpop.xlane.xlu0 %529
    %531 = vmax.xlane.f32.xlu0 %v420
    %v532 = vpop.xlane.xlu0 %531
    %533 = vmax.xlane.f32.xlu0 %v425
    %v534 = vpop.xlane.xlu0 %533
    %535 = vmax.xlane.f32.xlu0 %v428
    %v536 = vpop.xlane.xlu0 %535
    %537 = vmax.xlane.f32.xlu0 %v433
    %v538 = vpop.xlane.xlu0 %537
    %539 = vmax.xlane.f32.xlu0 %v436
    %v540 = vpop.xlane.xlu0 %539
    %541 = vmax.xlane.f32.xlu0 %v441
    %v542 = vpop.xlane.xlu0 %541
    %543 = vmax.xlane.f32.xlu0 %v444
    %v544 = vpop.xlane.xlu0 %543
    %v545 = vsub.f32 %v385, %v514
    %v546 = vsub.f32 %v388, %v516
    %v547 = vsub.f32 %v393, %v518
    %v548 = vsub.f32 %v396, %v520
    %v549 = vsub.f32 %v401, %v522
    %v550 = vsub.f32 %v404, %v524
    %v551 = vsub.f32 %v409, %v526
    %v552 = vsub.f32 %v412, %v528
    %v553 = vsub.f32 %v417, %v530
    %v554 = vsub.f32 %v420, %v532
    %v555 = vsub.f32 %v425, %v534
    %v556 = vsub.f32 %v428, %v536
    %v557 = vsub.f32 %v433, %v538
    %v558 = vsub.f32 %v436, %v540
    %v559 = vsub.f32 %v441, %v542
    %v560 = vsub.f32 %v444, %v544
    %v561 = vmul.f32 %v545, 1.442695
    %v562 = vpow.pop %v561
    %v563 = vmul.f32 %v546, 1.442695
    %v564 = vpow.pop %v563
    %v565 = vmul.f32 %v547, 1.442695
    %v566 = vpow.pop %v565
    %v567 = vmul.f32 %v548, 1.442695
    %v568 = vpow.pop %v567
    %v569 = vmul.f32 %v549, 1.442695
    %v570 = vpow.pop %v569
    %v571 = vmul.f32 %v550, 1.442695
    %v572 = vpow.pop %v571
    %v573 = vmul.f32 %v551, 1.442695
    %v574 = vpow.pop %v573
    %v575 = vmul.f32 %v552, 1.442695
    %v576 = vpow.pop %v575
    %v577 = vmul.f32 %v553, 1.442695
    %v578 = vpow.pop %v577
    %v579 = vmul.f32 %v554, 1.442695
    %v580 = vpow.pop %v579
    %v581 = vmul.f32 %v555, 1.442695
    %v582 = vpow.pop %v581
    %v583 = vmul.f32 %v556, 1.442695
    %v584 = vpow.pop %v583
    %v585 = vmul.f32 %v557, 1.442695
    %v586 = vpow.pop %v585
    %v587 = vmul.f32 %v558, 1.442695
    %v588 = vpow.pop %v587
    %v589 = vmul.f32 %v559, 1.442695
    %v590 = vpow.pop %v589
    %v591 = vmul.f32 %v560, 1.442695
    %v592 = vpow.pop %v591
    %593 = vadd.xlane.f32.xlu0 %v562
    %v594 = vpop.xlane.xlu0 %593
    %595 = vadd.xlane.f32.xlu0 %v564
    %v596 = vpop.xlane.xlu0 %595
    %597 = vadd.xlane.f32.xlu0 %v566
    %v598 = vpop.xlane.xlu0 %597
    %599 = vadd.xlane.f32.xlu0 %v568
    %v600 = vpop.xlane.xlu0 %599
    %601 = vadd.xlane.f32.xlu0 %v570
    %v602 = vpop.xlane.xlu0 %601
    %603 = vadd.xlane.f32.xlu0 %v572
    %v604 = vpop.xlane.xlu0 %603
    %605 = vadd.xlane.f32.xlu0 %v574
    %v606 = vpop.xlane.xlu0 %605
    %607 = vadd.xlane.f32.xlu0 %v576
    %v608 = vpop.xlane.xlu0 %607
    %609 = vadd.xlane.f32.xlu0 %v578
    %v610 = vpop.xlane.xlu0 %609
    %611 = vadd.xlane.f32.xlu0 %v580
    %v612 = vpop.xlane.xlu0 %611
    %613 = vadd.xlane.f32.xlu0 %v582
    %v614 = vpop.xlane.xlu0 %613
    %615 = vadd.xlane.f32.xlu0 %v584
    %v616 = vpop.xlane.xlu0 %615
    %617 = vadd.xlane.f32.xlu0 %v586
    %v618 = vpop.xlane.xlu0 %617
    %619 = vadd.xlane.f32.xlu0 %v588
    %v620 = vpop.xlane.xlu0 %619
    %621 = vadd.xlane.f32.xlu0 %v590
    %v622 = vpop.xlane.xlu0 %621
    %623 = vadd.xlane.f32.xlu0 %v592
    %v624 = vpop.xlane.xlu0 %623
    %v625 = vlog2.pop %v594
    %v626 = vmul.f32 %v625, 0.6931472
    %v627 = vlog2.pop %v596
    %v628 = vmul.f32 %v627, 0.6931472
    %v629 = vlog2.pop %v598
    %v630 = vmul.f32 %v629, 0.6931472
    %v631 = vlog2.pop %v600
    %v632 = vmul.f32 %v631, 0.6931472
    %v633 = vlog2.pop %v602
    %v634 = vmul.f32 %v633, 0.6931472
    %v635 = vlog2.pop %v604
    %v636 = vmul.f32 %v635, 0.6931472
    %v637 = vlog2.pop %v606
    %v638 = vmul.f32 %v637, 0.6931472
    %v639 = vlog2.pop %v608
    %v640 = vmul.f32 %v639, 0.6931472
    %v641 = vlog2.pop %v610
    %v642 = vmul.f32 %v641, 0.6931472
    %v643 = vlog2.pop %v612
    %v644 = vmul.f32 %v643, 0.6931472
    %v645 = vlog2.pop %v614
    %v646 = vmul.f32 %v645, 0.6931472
    %v647 = vlog2.pop %v616
    %v648 = vmul.f32 %v647, 0.6931472
    %v649 = vlog2.pop %v618
    %v650 = vmul.f32 %v649, 0.6931472
    %v651 = vlog2.pop %v620
    %v652 = vmul.f32 %v651, 0.6931472
    %v653 = vlog2.pop %v622
    %v654 = vmul.f32 %v653, 0.6931472
    %v655 = vlog2.pop %v624
    %v656 = vmul.f32 %v655, 0.6931472
    %v657 = vadd.f32 %v514, %v626
    %v658 = vadd.f32 %v516, %v628
    %v659 = vadd.f32 %v518, %v630
    %v660 = vadd.f32 %v520, %v632
    %v661 = vadd.f32 %v522, %v634
    %v662 = vadd.f32 %v524, %v636
    %v663 = vadd.f32 %v526, %v638
    %v664 = vadd.f32 %v528, %v640
    %v665 = vadd.f32 %v530, %v642
    %v666 = vadd.f32 %v532, %v644
    %v667 = vadd.f32 %v534, %v646
    %v668 = vadd.f32 %v536, %v648
    %v669 = vadd.f32 %v538, %v650
    %v670 = vadd.f32 %v540, %v652
    %v671 = vadd.f32 %v542, %v654
    %v672 = vadd.f32 %v544, %v656
    %673 = vset.pattern.permute.xlu0 0
    %674 = vperm.xlu0 %673, %v447
    %v675 = vpop.permute.xlu0 %674
    %676 = vset.pattern.permute.xlu0 0
    %677 = vperm.xlu0 %676, %v448
    %v678 = vpop.permute.xlu0 %677
    %679 = vset.pattern.permute.xlu0 0
    %680 = vperm.xlu0 %679, %v449
    %v681 = vpop.permute.xlu0 %680
    %682 = vset.pattern.permute.xlu0 0
    %683 = vperm.xlu0 %682, %v450
    %v684 = vpop.permute.xlu0 %683
    %685 = vset.pattern.permute.xlu0 0
    %686 = vperm.xlu0 %685, %v451
    %v687 = vpop.permute.xlu0 %686
    %688 = vset.pattern.permute.xlu0 0
    %689 = vperm.xlu0 %688, %v452
    %v690 = vpop.permute.xlu0 %689
    %691 = vset.pattern.permute.xlu0 0
    %692 = vperm.xlu0 %691, %v453
    %v693 = vpop.permute.xlu0 %692
    %694 = vset.pattern.permute.xlu0 0
    %695 = vperm.xlu0 %694, %v454
    %v696 = vpop.permute.xlu0 %695
    %697 = vset.pattern.permute.xlu0 0
    %698 = vperm.xlu0 %697, %v455
    %v699 = vpop.permute.xlu0 %698
    %700 = vset.pattern.permute.xlu0 0
    %701 = vperm.xlu0 %700, %v456
    %v702 = vpop.permute.xlu0 %701
    %703 = vset.pattern.permute.xlu0 0
    %704 = vperm.xlu0 %703, %v457
    %v705 = vpop.permute.xlu0 %704
    %706 = vset.pattern.permute.xlu0 0
    %707 = vperm.xlu0 %706, %v458
    %v708 = vpop.permute.xlu0 %707
    %709 = vset.pattern.permute.xlu0 0
    %710 = vperm.xlu0 %709, %v459
    %v711 = vpop.permute.xlu0 %710
    %712 = vset.pattern.permute.xlu0 0
    %713 = vperm.xlu0 %712, %v460
    %v714 = vpop.permute.xlu0 %713
    %715 = vset.pattern.permute.xlu0 0
    %716 = vperm.xlu0 %715, %v461
    %v717 = vpop.permute.xlu0 %716
    %718 = vset.pattern.permute.xlu0 0
    %719 = vperm.xlu0 %718, %v462
    %v720 = vpop.permute.xlu0 %719
    %vm721 = vcmp.eq.s32.totalorder %v512, %v675
    %vm722 = vcmp.eq.s32.totalorder %v512, %v678
    %vm723 = vcmp.eq.s32.totalorder %v512, %v681
    %vm724 = vcmp.eq.s32.totalorder %v512, %v684
    %vm725 = vcmp.eq.s32.totalorder %v512, %v687
    %vm726 = vcmp.eq.s32.totalorder %v512, %v690
    %vm727 = vcmp.eq.s32.totalorder %v512, %v693
    %vm728 = vcmp.eq.s32.totalorder %v512, %v696
    %vm729 = vcmp.eq.s32.totalorder %v512, %v699
    %vm730 = vcmp.eq.s32.totalorder %v512, %v702
    %vm731 = vcmp.eq.s32.totalorder %v512, %v705
    %vm732 = vcmp.eq.s32.totalorder %v512, %v708
    %vm733 = vcmp.eq.s32.totalorder %v512, %v711
    %vm734 = vcmp.eq.s32.totalorder %v512, %v714
    %vm735 = vcmp.eq.s32.totalorder %v512, %v717
    %vm736 = vcmp.eq.s32.totalorder %v512, %v720
    %v737 = vsel %vm721, %v385, 0.0
    %v738 = vsel %vm722, %v388, 0.0
    %v739 = vsel %vm723, %v393, 0.0
    %v740 = vsel %vm724, %v396, 0.0
    %v741 = vsel %vm725, %v401, 0.0
    %v742 = vsel %vm726, %v404, 0.0
    %v743 = vsel %vm727, %v409, 0.0
    %v744 = vsel %vm728, %v412, 0.0
    %v745 = vsel %vm729, %v417, 0.0
    %v746 = vsel %vm730, %v420, 0.0
    %v747 = vsel %vm731, %v425, 0.0
    %v748 = vsel %vm732, %v428, 0.0
    %v749 = vsel %vm733, %v433, 0.0
    %v750 = vsel %vm734, %v436, 0.0
    %v751 = vsel %vm735, %v441, 0.0
    %v752 = vsel %vm736, %v444, 0.0
    %753 = vadd.xlane.f32.xlu0 %v737
    %v754 = vpop.xlane.xlu0 %753
    %755 = vadd.xlane.f32.xlu0 %v738
    %v756 = vpop.xlane.xlu0 %755
    %757 = vadd.xlane.f32.xlu0 %v739
    %v758 = vpop.xlane.xlu0 %757
    %759 = vadd.xlane.f32.xlu0 %v740
    %v760 = vpop.xlane.xlu0 %759
    %761 = vadd.xlane.f32.xlu0 %v741
    %v762 = vpop.xlane.xlu0 %761
    %763 = vadd.xlane.f32.xlu0 %v742
    %v764 = vpop.xlane.xlu0 %763
    %765 = vadd.xlane.f32.xlu0 %v743
    %v766 = vpop.xlane.xlu0 %765
    %767 = vadd.xlane.f32.xlu0 %v744
    %v768 = vpop.xlane.xlu0 %767
    %769 = vadd.xlane.f32.xlu0 %v745
    %v770 = vpop.xlane.xlu0 %769
    %771 = vadd.xlane.f32.xlu0 %v746
    %v772 = vpop.xlane.xlu0 %771
    %773 = vadd.xlane.f32.xlu0 %v747
    %v774 = vpop.xlane.xlu0 %773
    %775 = vadd.xlane.f32.xlu0 %v748
    %v776 = vpop.xlane.xlu0 %775
    %777 = vadd.xlane.f32.xlu0 %v749
    %v778 = vpop.xlane.xlu0 %777
    %779 = vadd.xlane.f32.xlu0 %v750
    %v780 = vpop.xlane.xlu0 %779
    %781 = vadd.xlane.f32.xlu0 %v751
    %v782 = vpop.xlane.xlu0 %781
    %783 = vadd.xlane.f32.xlu0 %v752
    %v784 = vpop.xlane.xlu0 %783
    %v785 = vsub.f32 %v657, %v754
    %v786 = vsub.f32 %v658, %v756
    %v787 = vsub.f32 %v659, %v758
    %v788 = vsub.f32 %v660, %v760
    %v789 = vsub.f32 %v661, %v762
    %v790 = vsub.f32 %v662, %v764
    %v791 = vsub.f32 %v663, %v766
    %v792 = vsub.f32 %v664, %v768
    %v793 = vsub.f32 %v665, %v770
    %v794 = vsub.f32 %v666, %v772
    %v795 = vsub.f32 %v667, %v774
    %v796 = vsub.f32 %v668, %v776
    %v797 = vsub.f32 %v669, %v778
    %v798 = vsub.f32 %v670, %v780
    %v799 = vsub.f32 %v671, %v782
    %v800 = vsub.f32 %v672, %v784
    %v801 = vmul.f32 %v785, %v495
    %v802 = vmul.f32 %v786, %v496
    %v803 = vmul.f32 %v787, %v497
    %v804 = vmul.f32 %v788, %v498
    %v805 = vmul.f32 %v789, %v499
    %v806 = vmul.f32 %v790, %v500
    %v807 = vmul.f32 %v791, %v501
    %v808 = vmul.f32 %v792, %v502
    %v809 = vmul.f32 %v793, %v503
    %v810 = vmul.f32 %v794, %v504
    %v811 = vmul.f32 %v795, %v505
    %v812 = vmul.f32 %v796, %v506
    %v813 = vmul.f32 %v797, %v507
    %v814 = vmul.f32 %v798, %v508
    %v815 = vmul.f32 %v799, %v509
    %v816 = vmul.f32 %v800, %v510
    %vm817 = vcmask 7168
    %v818 = vsel %vm817, %v801, 0.0
    %v819 = vsel %vm817, %v802, 0.0
    %v820 = vadd.f32 %v818, %v819
    %v821 = vsel %vm817, %v803, 0.0
    %v822 = vadd.f32 %v820, %v821
    %v823 = vsel %vm817, %v804, 0.0
    %v824 = vadd.f32 %v822, %v823
    %v825 = vsel %vm817, %v805, 0.0
    %v826 = vadd.f32 %v824, %v825
    %v827 = vsel %vm817, %v806, 0.0
    %v828 = vadd.f32 %v826, %v827
    %v829 = vsel %vm817, %v807, 0.0
    %v830 = vadd.f32 %v828, %v829
    %v831 = vsel %vm817, %v808, 0.0
    %v832 = vadd.f32 %v830, %v831
    %v833 = vsel %vm817, %v809, 0.0
    %v834 = vadd.f32 %v832, %v833
    %v835 = vsel %vm817, %v810, 0.0
    %v836 = vadd.f32 %v834, %v835
    %v837 = vsel %vm817, %v811, 0.0
    %v838 = vadd.f32 %v836, %v837
    %v839 = vsel %vm817, %v812, 0.0
    %v840 = vadd.f32 %v838, %v839
    %v841 = vsel %vm817, %v813, 0.0
    %v842 = vadd.f32 %v840, %v841
    %v843 = vsel %vm817, %v814, 0.0
    %v844 = vadd.f32 %v842, %v843
    %v845 = vsel %vm817, %v815, 0.0
    %v846 = vadd.f32 %v844, %v845
    %v847 = vsel %vm817, %v816, 0.0
    %v848 = vadd.f32 %v846, %v847
    %849 = vadd.xlane.f32.xlu0 %v848
    %v850 = vpop.xlane.xlu0 %849
    %v851 = vrot.slane %v850, 4
    %v852 = vadd.f32 %v850, %v851
    %v853 = vrot.slane %v852, 2
    %v854 = vadd.f32 %v852, %v853
    %v855 = vrot.slane %v854, 1
    %v856 = vadd.f32 %v854, %v855
    %s857 = vtos %v856
    %vm858 = vcmp.ge.f32.partialorder %v754, %v514
    %vm859 = vcmp.ge.f32.partialorder %v756, %v516
    %vm860 = vcmp.ge.f32.partialorder %v758, %v518
    %vm861 = vcmp.ge.f32.partialorder %v760, %v520
    %vm862 = vcmp.ge.f32.partialorder %v762, %v522
    %vm863 = vcmp.ge.f32.partialorder %v764, %v524
    %vm864 = vcmp.ge.f32.partialorder %v766, %v526
    %vm865 = vcmp.ge.f32.partialorder %v768, %v528
    %vm866 = vcmp.ge.f32.partialorder %v770, %v530
    %vm867 = vcmp.ge.f32.partialorder %v772, %v532
    %vm868 = vcmp.ge.f32.partialorder %v774, %v534
    %vm869 = vcmp.ge.f32.partialorder %v776, %v536
    %vm870 = vcmp.ge.f32.partialorder %v778, %v538
    %vm871 = vcmp.ge.f32.partialorder %v780, %v540
    %vm872 = vcmp.ge.f32.partialorder %v782, %v542
    %vm873 = vcmp.ge.f32.partialorder %v784, %v544
    %v874 = vsel %vm858, %v495, 0.0
    %v875 = vsel %vm859, %v496, 0.0
    %v876 = vsel %vm860, %v497, 0.0
    %v877 = vsel %vm861, %v498, 0.0
    %v878 = vsel %vm862, %v499, 0.0
    %v879 = vsel %vm863, %v500, 0.0
    %v880 = vsel %vm864, %v501, 0.0
    %v881 = vsel %vm865, %v502, 0.0
    %v882 = vsel %vm866, %v503, 0.0
    %v883 = vsel %vm867, %v504, 0.0
    %v884 = vsel %vm868, %v505, 0.0
    %v885 = vsel %vm869, %v506, 0.0
    %v886 = vsel %vm870, %v507, 0.0
    %v887 = vsel %vm871, %v508, 0.0
    %v888 = vsel %vm872, %v509, 0.0
    %v889 = vsel %vm873, %v510, 0.0
    %v890 = vsel %vm817, %v874, 0.0
    %v891 = vsel %vm817, %v875, 0.0
    %v892 = vadd.f32 %v890, %v891
    %v893 = vsel %vm817, %v876, 0.0
    %v894 = vadd.f32 %v892, %v893
    %v895 = vsel %vm817, %v877, 0.0
    %v896 = vadd.f32 %v894, %v895
    %v897 = vsel %vm817, %v878, 0.0
    %v898 = vadd.f32 %v896, %v897
    %v899 = vsel %vm817, %v879, 0.0
    %v900 = vadd.f32 %v898, %v899
    %v901 = vsel %vm817, %v880, 0.0
    %v902 = vadd.f32 %v900, %v901
    %v903 = vsel %vm817, %v881, 0.0
    %v904 = vadd.f32 %v902, %v903
    %v905 = vsel %vm817, %v882, 0.0
    %v906 = vadd.f32 %v904, %v905
    %v907 = vsel %vm817, %v883, 0.0
    %v908 = vadd.f32 %v906, %v907
    %v909 = vsel %vm817, %v884, 0.0
    %v910 = vadd.f32 %v908, %v909
    %v911 = vsel %vm817, %v885, 0.0
    %v912 = vadd.f32 %v910, %v911
    %v913 = vsel %vm817, %v886, 0.0
    %v914 = vadd.f32 %v912, %v913
    %v915 = vsel %vm817, %v887, 0.0
    %v916 = vadd.f32 %v914, %v915
    %v917 = vsel %vm817, %v888, 0.0
    %v918 = vadd.f32 %v916, %v917
    %v919 = vsel %vm817, %v889, 0.0
    %v920 = vadd.f32 %v918, %v919
    %921 = vadd.xlane.f32.xlu0 %v920
    %v922 = vpop.xlane.xlu0 %921
    %v923 = vrot.slane %v922, 4
    %v924 = vadd.f32 %v922, %v923
    %v925 = vrot.slane %v924, 2
    %v926 = vadd.f32 %v924, %v925
    %v927 = vrot.slane %v926, 1
    %v928 = vadd.f32 %v926, %v927
    %s929 = vtos %v928
    %v930 = vld [vmem:[#allocation2] sm:$0xff]
    %v931 = vstv %s857
    %v932 = vadd.f32 %v930, %v931
    %933 = vst [vmem:[#allocation2] sm:$0xff] %v932
    %v934 = vld [vmem:[#allocation4] sm:$0xff]
    %v935 = vstv %s929
    %v936 = vadd.f32 %v934, %v935
    %937 = vst [vmem:[#allocation4] sm:$0xff] %v936
    // Predicated region
    $region30: #{tpu_custom_call.1} parent=1 // pred_check
      _
    $region31: #{tpu_custom_call.1} parent=1 // pred_check_branch
      %939 = sbr.rel (0) target = $region33
    $region32: #{tpu_custom_call.1} parent=1 // pred_region
      %s941 = ssub.s32 128, 128
      %942 = vsyncadd [#allocation3], %s941
      %s944 = sshll.u32 [#allocation2], 4
      %s945 = int_to_ptr.vmem [resolvable:$true] %s944
      %947 = dma.vmem_to_hbm [thread:$0]  %s945, 128, %s6, [#allocation3]
    $region33: #{tpu_custom_call.1} parent=1 // pred_fallthru
      _
    // Predicated region
    $region34: #{tpu_custom_call.1} parent=1 // pred_check
      _
    $region35: #{tpu_custom_call.1} parent=1 // pred_check_branch
      %949 = sbr.rel (0) target = $region37
    $region36: #{tpu_custom_call.1} parent=1 // pred_region
      %s951 = ssub.s32 128, 128
      %952 = vsyncadd [#allocation5], %s951
      %s954 = sshll.u32 [#allocation4], 4
      %s955 = int_to_ptr.vmem [resolvable:$true] %s954
      %957 = dma.vmem_to_hbm [thread:$0]  %s955, 128, %s7, [#allocation5]
    $region37: #{tpu_custom_call.1} parent=1 // pred_fallthru
      _
    // Predicated region
    $region38: #{tpu_custom_call.1} parent=1 // pred_check
      _
    $region39: #{tpu_custom_call.1} parent=1 // pred_check_branch
      %959 = sbr.rel (0) target = $region41
    $region40: #{tpu_custom_call.1} parent=1 // pred_region
      %960 = dma.done [#allocation3], 128
    $region41: #{tpu_custom_call.1} parent=1 // pred_fallthru
      _
    // Predicated region
    $region42: #{tpu_custom_call.1} parent=1 // pred_check
      _
    $region43: #{tpu_custom_call.1} parent=1 // pred_check_branch
      %962 = sbr.rel (0) target = $region45
    $region44: #{tpu_custom_call.1} parent=1 // pred_region
      %963 = dma.done [#allocation5], 128
    $region45: #{tpu_custom_call.1} parent=1 // pred_fallthru
      _
    %964 = vsyncpa [#allocation3], 1
    %965 = vsyncpa [#allocation5], 1

</llo_original>
